<compile_context>
chip_gen: v6e
topology: v6e:2x2x1
jax: 0.10.0
libtpu: 0.0.40
codegen_flags: <defaults>
</compile_context>

<pallas_src>
from typing import List

import jax
import jax.numpy as jnp
from jax import lax
from jax.experimental import pallas as pl
from jax.experimental.pallas import tpu as pltpu


_LANE = 128
_DEFAULT_TILE_B = 4096  # per-step-overhead bound -> big tiles; multiple of 128


def _make_mlp_kernel(n_hidden: int):
    """n_hidden Linear+ReLU layers + output Linear; activations [features, tile]."""

    def kernel(*refs):
        # refs = u, i, w1_u, w1_i, b1, (w_l, b_l)*(n_hidden-1), w_out, b_out, o
        u_ref, i_ref = refs[0], refs[1]
        w1u_ref, w1i_ref, b1_ref = refs[2], refs[3], refs[4]
        w_out_ref, b_out_ref = refs[-3], refs[-2]
        o_ref = refs[-1]

        # Layer 1 with the concat fused away:
        #   W1 @ [u; i]^T == W1_u . u^T + W1_i . i^T
        # u/i arrive as [tile, E]; contracting dim 1 of both operands yields
        # h as [L1, tile] (batch on lanes) with no separate transpose pass.
        dn = (((1,), (1,)), ((), ()))
        h = (lax.dot_general(w1u_ref[...], u_ref[...], dn,
                             preferred_element_type=jnp.float32)
             + lax.dot_general(w1i_ref[...], i_ref[...], dn,
                               preferred_element_type=jnp.float32)
             + b1_ref[...])
        h = jnp.maximum(h, 0.0)
        # TODO(synk): nn.Dropout(p=0.2) is identity in eval mode; training-mode
        # dropout (pltpu.prng_random_bits mask) intentionally not applied here.

        idx = 5
        for _ in range(n_hidden - 1):
            w_ref, b_ref = refs[idx], refs[idx + 1]
            idx += 2
            # f32 weights x f32 activations: no bf16 packing between layers
            # (pure overhead on v5e; irrelevant on v6e/v7x at these tiny K).
            h = jnp.dot(w_ref[...], h,
                        preferred_element_type=jnp.float32) + b_ref[...]
            h = jnp.maximum(h, 0.0)

        # Output layer: [1, L_last] @ [L_last, tile] -> lane-dense [1, tile].
        o_ref[...] = (jnp.dot(w_out_ref[...], h,
                              preferred_element_type=jnp.float32)
                      + b_out_ref[...])

    return kernel


def ncf_mlp_forward(user_indices, item_indices, params, *, tile_b=_DEFAULT_TILE_B):
    """NCF-MLP forward. Matmul/ReLU hot path runs inside one Pallas kernel."""
    user_tbl = params["user_embedding"]   # [num_users, E]  bf16 (cast once at init)
    item_tbl = params["item_embedding"]   # [num_items, E]  bf16 (cast once at init)
    hidden = params["hidden"]             # list of (W [out,in] f32, b [out,1] f32)
    w_out, b_out = params["output"]       # [1, last] f32, [1, 1] f32

    E = user_tbl.shape[1]
    B = user_indices.shape[0]
    n_hidden = len(hidden)

    cdt = jnp.bfloat16
    # Tables are stored bf16 at init, so these are no-ops (no per-call table pass).
    user_tbl = user_tbl.astype(cdt)
    item_tbl = item_tbl.astype(cdt)

    # Batch tile: multiple of 128, large enough to amortize per-step overhead,
    # capped so the grid keeps >= 2 steps (both TensorCores on v7x).
    b_pad_min = -(-B // _LANE) * _LANE
    tile = max(_LANE, (min(int(tile_b), b_pad_min) // _LANE) * _LANE)
    half = ((b_pad_min // 2) // _LANE) * _LANE
    if half >= _LANE:
        tile = min(tile, half)
    b_pad = -(-B // tile) * tile

    # Pad only the cheap int32 index vectors (index 0 is a valid row); padded
    # rows compute garbage that is sliced off at the end.  No pad/transpose
    # passes over the gathered [B, E] activations.
    if b_pad != B:
        user_indices = jnp.pad(user_indices, (0, b_pad - B))
        item_indices = jnp.pad(item_indices, (0, b_pad - B))

    # Glue: embedding gather (bf16 stream), contiguous [b_pad, E] layout.
    # TODO(synk): the gather could be fused into the kernel via scalar-prefetched
    # index refs (PrefetchScalarGridSpec); kept in XLA since it is already the
    # minimal single HBM pass over the gathered data.
    u = jnp.take(user_tbl, user_indices, axis=0)    # [b_pad, E] bf16
    it = jnp.take(item_tbl, item_indices, axis=0)   # [b_pad, E] bf16

    # Split the first weight so the concat never materializes.  W1 halves are
    # bf16 to match the bf16 embeddings; later-layer weights/biases stay f32.
    w1, b1 = hidden[0]
    operands = [u, it,
                w1[:, :E].astype(cdt), w1[:, E:].astype(cdt),
                b1.astype(jnp.float32)]
    for (w, b) in hidden[1:]:
        operands += [w.astype(jnp.float32), b.astype(jnp.float32)]
    operands += [w_out.astype(jnp.float32), b_out.astype(jnp.float32)]

    # Activation tiles stream through the pipeline; weights/biases use constant
    # index maps so they stay VMEM-resident across grid steps.
    # (If an xprof trace on v7x shows exposed input DMA, add
    #  pipeline_mode=pl.Buffered(3) to act_spec only.)
    act_spec = pl.BlockSpec((tile, E), lambda g: (g, 0))
    in_specs = [act_spec, act_spec] + [
        pl.BlockSpec(a.shape, lambda g: (0, 0)) for a in operands[2:]
    ]
    out_spec = pl.BlockSpec((1, tile), lambda g: (0, g))

    # Advisory cost estimate so XLA schedules the gathers around the call.
    layer_sizes = [w.shape[0] for (w, _) in hidden]
    feat_flops = 2 * (2 * E) * layer_sizes[0]
    for a, c in zip(layer_sizes[:-1], layer_sizes[1:]):
        feat_flops += 2 * a * c
    feat_flops += 2 * layer_sizes[-1]
    weight_bytes = sum(int(a.size) * a.dtype.itemsize for a in operands[2:])
    cost = pl.CostEstimate(
        flops=int(feat_flops) * b_pad,
        transcendentals=0,
        bytes_accessed=2 * E * b_pad * 2 + weight_bytes + b_pad * 4,
    )

    out = pl.pallas_call(
        _make_mlp_kernel(n_hidden),
        out_shape=jax.ShapeDtypeStruct((1, b_pad), jnp.float32),
        grid=(b_pad // tile,),
        in_specs=in_specs,
        out_specs=out_spec,
        compiler_params=pltpu.CompilerParams(
            dimension_semantics=("parallel",)),
        cost_estimate=cost,
    )(*operands)

    return out[0, :B]  # == output.view(-1)


def init_params(key, num_users: int, num_items: int, embedding_dim: int,
                layer_sizes: List[int]):
    """Deterministic init mirroring the PyTorch _init_weights(); torch layouts.

    Embedding tables are stored in bf16 once here (so the per-call gather streams
    half the HBM bytes); all other parameters stay f32.
    """
    keys = jax.random.split(key, 3 + len(layer_sizes))

    params = {}
    params["user_embedding"] = (0.01 * jax.random.normal(
        keys[0], (num_users, embedding_dim), dtype=jnp.float32)).astype(jnp.bfloat16)
    params["item_embedding"] = (0.01 * jax.random.normal(
        keys[1], (num_items, embedding_dim), dtype=jnp.float32)).astype(jnp.bfloat16)

    hidden = []
    in_size = 2 * embedding_dim
    for li, size in enumerate(layer_sizes):
        # kaiming_uniform_(a=1): bound = sqrt(6 / ((1 + a^2) * fan_in)) = sqrt(3 / fan_in)
        bound = (3.0 / in_size) ** 0.5
        w = jax.random.uniform(keys[2 + li], (size, in_size), dtype=jnp.float32,
                               minval=-bound, maxval=bound)   # [out, in] torch layout
        b = jnp.zeros((size, 1), dtype=jnp.float32)           # constant_(bias, 0)
        hidden.append((w, b))
        in_size = size
    params["hidden"] = hidden

    bound = (3.0 / in_size) ** 0.5
    w_o = jax.random.uniform(keys[2 + len(layer_sizes)], (1, in_size),
                             dtype=jnp.float32, minval=-bound, maxval=bound)
    b_o = jnp.zeros((1, 1), dtype=jnp.float32)
    params["output"] = (w_o, b_o)
    return params


if __name__ == "__main__":
    num_users = 32
    num_items = 48
    embedding_dim = 16
    layer_sizes = [32, 16]
    batch = 8

    key = jax.random.PRNGKey(0)
    k_params, k_u, k_i = jax.random.split(key, 3)

    params = init_params(k_params, num_users, num_items, embedding_dim, layer_sizes)

    user_indices = jax.random.randint(k_u, (batch,), 0, num_users, dtype=jnp.int32)
    item_indices = jax.random.randint(k_i, (batch,), 0, num_items, dtype=jnp.int32)

    fwd = jax.jit(ncf_mlp_forward)
    out = jax.block_until_ready(fwd(user_indices, item_indices, params))

    # Reference mirroring the kernel's bf16-embedding / f32-accumulate arithmetic.
    bf16 = jnp.bfloat16
    E = embedding_dim
    u = jnp.take(params["user_embedding"], user_indices, axis=0)    # bf16 [B, E]
    it = jnp.take(params["item_embedding"], item_indices, axis=0)   # bf16 [B, E]
    w1, b1 = params["hidden"][0]
    h = (jnp.dot(u, w1[:, :E].astype(bf16).T, preferred_element_type=jnp.float32)
         + jnp.dot(it, w1[:, E:].astype(bf16).T, preferred_element_type=jnp.float32)
         + b1.reshape(1, -1))
    h = jnp.maximum(h, 0.0)
    for (w, b) in params["hidden"][1:]:
        h = jnp.maximum(jnp.dot(h, w.T, preferred_element_type=jnp.float32)
                        + b.reshape(1, -1), 0.0)
    w_o, b_o = params["output"]
    ref = (jnp.dot(h, w_o.T, preferred_element_type=jnp.float32)
           + b_o.reshape(1, -1)).reshape(-1)

    assert out.shape == (batch,), out.shape
    assert jnp.allclose(out, ref, atol=1e-4, rtol=1e-3), (out, ref)

    # Sanity vs. pure-f32 math on the (bf16-rounded) embeddings / f32 weights.
    vf = jnp.concatenate([u.astype(jnp.float32), it.astype(jnp.float32)], axis=-1)
    for (w, b) in params["hidden"]:
        vf = jnp.maximum(vf @ w.T + b.reshape(1, -1), 0.0)
    ref_f32 = (vf @ w_o.T + b_o.reshape(1, -1)).reshape(-1)
    assert jnp.allclose(out, ref_f32, atol=1e-2, rtol=5e-2), (out, ref_f32)

    print("KERNEL_OK")
</pallas_src>

<mosaic_0001>
module attributes {stable_mosaic.version = 11 : i64} {
  func.func @kernel(%arg0: i32, %arg1: memref<128x16xbf16, #tpu.memory_space<vmem>>, %arg2: memref<128x16xbf16, #tpu.memory_space<vmem>>, %arg3: memref<32x16xbf16, #tpu.memory_space<vmem>>, %arg4: memref<32x16xbf16, #tpu.memory_space<vmem>>, %arg5: memref<32x1xf32, #tpu.memory_space<vmem>>, %arg6: memref<16x32xf32, #tpu.memory_space<vmem>>, %arg7: memref<16x1xf32, #tpu.memory_space<vmem>>, %arg8: memref<1x16xf32, #tpu.memory_space<vmem>>, %arg9: memref<1x1xf32, #tpu.memory_space<vmem>>, %arg10: memref<1x128xf32, #tpu.memory_space<vmem>>) attributes {dimension_semantics = [#tpu.dimension_semantics<parallel>], iteration_bounds = array<i64: 1>, scalar_prefetch = 0 : i64, scratch_operands = 0 : i64, tpu.core_type = #tpu.core_type<tc>, window_params = [{transform_indices = @transform_0, window_bounds = array<i64: 128, 16>}, {transform_indices = @transform_1, window_bounds = array<i64: 128, 16>}, {pipeline_mode = #tpu.pipeline_mode<synchronous>, transform_indices = @transform_2, window_bounds = array<i64: 32, 16>}, {pipeline_mode = #tpu.pipeline_mode<synchronous>, transform_indices = @transform_3, window_bounds = array<i64: 32, 16>}, {pipeline_mode = #tpu.pipeline_mode<synchronous>, transform_indices = @transform_4, window_bounds = array<i64: 32, 1>}, {pipeline_mode = #tpu.pipeline_mode<synchronous>, transform_indices = @transform_5, window_bounds = array<i64: 16, 32>}, {pipeline_mode = #tpu.pipeline_mode<synchronous>, transform_indices = @transform_6, window_bounds = array<i64: 16, 1>}, {pipeline_mode = #tpu.pipeline_mode<synchronous>, transform_indices = @transform_7, window_bounds = array<i64: 1, 16>}, {pipeline_mode = #tpu.pipeline_mode<synchronous>, transform_indices = @transform_8, window_bounds = array<i64: 1, 1>}, {transform_indices = @transform_9, window_bounds = array<i64: 1, 128>}]} {
    %c0 = arith.constant 0 : index
    %c0_0 = arith.constant 0 : index
    %0 = vector.load %arg3[%c0, %c0_0] : memref<32x16xbf16, #tpu.memory_space<vmem>>, vector<32x16xbf16>
    %c0_1 = arith.constant 0 : index
    %c0_2 = arith.constant 0 : index
    %1 = vector.load %arg1[%c0_1, %c0_2] : memref<128x16xbf16, #tpu.memory_space<vmem>>, vector<128x16xbf16>
    %cst = arith.constant dense<0.000000e+00> : vector<32x128xf32>
    %2 = tpu.matmul %0, %1, %cst {dimension_numbers = #tpu.dot_dimension_numbers<[1], [1], [0], [0], [0, 0, 1, 0], [], []>} : vector<32x16xbf16>, vector<128x16xbf16>, vector<32x128xf32> -> vector<32x128xf32>
    %c0_3 = arith.constant 0 : index
    %c0_4 = arith.constant 0 : index
    %3 = vector.load %arg4[%c0_3, %c0_4] : memref<32x16xbf16, #tpu.memory_space<vmem>>, vector<32x16xbf16>
    %c0_5 = arith.constant 0 : index
    %c0_6 = arith.constant 0 : index
    %4 = vector.load %arg2[%c0_5, %c0_6] : memref<128x16xbf16, #tpu.memory_space<vmem>>, vector<128x16xbf16>
    %cst_7 = arith.constant dense<0.000000e+00> : vector<32x128xf32>
    %5 = tpu.matmul %3, %4, %cst_7 {dimension_numbers = #tpu.dot_dimension_numbers<[1], [1], [0], [0], [0, 0, 1, 0], [], []>} : vector<32x16xbf16>, vector<128x16xbf16>, vector<32x128xf32> -> vector<32x128xf32>
    %6 = arith.addf %2, %5 : vector<32x128xf32>
    %c0_8 = arith.constant 0 : index
    %c0_9 = arith.constant 0 : index
    %7 = vector.load %arg5[%c0_8, %c0_9] : memref<32x1xf32, #tpu.memory_space<vmem>>, vector<32x1xf32>
    %8 = vector.broadcast %7 : vector<32x1xf32> to vector<32x128xf32>
    %9 = arith.addf %6, %8 : vector<32x128xf32>
    %cst_10 = arith.constant 0.000000e+00 : f32
    %10 = vector.broadcast %cst_10 : f32 to vector<32x128xf32>
    %11 = arith.maximumf %9, %10 : vector<32x128xf32>
    %c0_11 = arith.constant 0 : index
    %c0_12 = arith.constant 0 : index
    %12 = vector.load %arg6[%c0_11, %c0_12] : memref<16x32xf32, #tpu.memory_space<vmem>>, vector<16x32xf32>
    %cst_13 = arith.constant dense<0.000000e+00> : vector<16x128xf32>
    %13 = tpu.matmul %12, %11, %cst_13 {dimension_numbers = #tpu.dot_dimension_numbers<[1], [0], [0], [1], [0, 0, 1, 1], [], []>} : vector<16x32xf32>, vector<32x128xf32>, vector<16x128xf32> -> vector<16x128xf32>
    %c0_14 = arith.constant 0 : index
    %c0_15 = arith.constant 0 : index
    %14 = vector.load %arg7[%c0_14, %c0_15] : memref<16x1xf32, #tpu.memory_space<vmem>>, vector<16x1xf32>
    %15 = vector.broadcast %14 : vector<16x1xf32> to vector<16x128xf32>
    %16 = arith.addf %13, %15 : vector<16x128xf32>
    %cst_16 = arith.constant 0.000000e+00 : f32
    %17 = vector.broadcast %cst_16 : f32 to vector<16x128xf32>
    %18 = arith.maximumf %16, %17 : vector<16x128xf32>
    %c0_17 = arith.constant 0 : index
    %c0_18 = arith.constant 0 : index
    %19 = vector.load %arg8[%c0_17, %c0_18] : memref<1x16xf32, #tpu.memory_space<vmem>>, vector<1x16xf32>
    %cst_19 = arith.constant dense<0.000000e+00> : vector<1x128xf32>
    %20 = tpu.matmul %19, %18, %cst_19 {dimension_numbers = #tpu.dot_dimension_numbers<[1], [0], [0], [1], [0, 0, 1, 1], [], []>} : vector<1x16xf32>, vector<16x128xf32>, vector<1x128xf32> -> vector<1x128xf32>
    %c0_20 = arith.constant 0 : index
    %c0_21 = arith.constant 0 : index
    %21 = vector.load %arg9[%c0_20, %c0_21] : memref<1x1xf32, #tpu.memory_space<vmem>>, vector<1x1xf32>
    %22 = vector.broadcast %21 : vector<1x1xf32> to vector<1x128xf32>
    %23 = arith.addf %20, %22 : vector<1x128xf32>
    %c0_22 = arith.constant 0 : index
    %c0_23 = arith.constant 0 : index
    %24 = vector.load %arg10[%c0_22, %c0_23] : memref<1x128xf32, #tpu.memory_space<vmem>>, vector<1x128xf32>
    tpu.vector_store %arg10[%c0_22, %c0_23], %23 {strides = array<i32>} : memref<1x128xf32, #tpu.memory_space<vmem>>, vector<1x128xf32>,
    return
  }
  func.func @transform_0(%arg0: i32) -> (i32, i32) {
    %c0_i32 = arith.constant 0 : i32
    %c0_i32_0 = arith.constant 0 : i32
    return %arg0, %c0_i32 : i32, i32
  }
  func.func @transform_1(%arg0: i32) -> (i32, i32) {
    %c0_i32 = arith.constant 0 : i32
    %c0_i32_0 = arith.constant 0 : i32
    return %arg0, %c0_i32 : i32, i32
  }
  func.func @transform_2(%arg0: i32) -> (i32, i32) {
    %c0_i32 = arith.constant 0 : i32
    %c0_i32_0 = arith.constant 0 : i32
    %c0_i32_1 = arith.constant 0 : i32
    return %c0_i32, %c0_i32_0 : i32, i32
  }
  func.func @transform_3(%arg0: i32) -> (i32, i32) {
    %c0_i32 = arith.constant 0 : i32
    %c0_i32_0 = arith.constant 0 : i32
    %c0_i32_1 = arith.constant 0 : i32
    return %c0_i32, %c0_i32_0 : i32, i32
  }
  func.func @transform_4(%arg0: i32) -> (i32, i32) {
    %c0_i32 = arith.constant 0 : i32
    %c0_i32_0 = arith.constant 0 : i32
    %c0_i32_1 = arith.constant 0 : i32
    return %c0_i32, %c0_i32_0 : i32, i32
  }
  func.func @transform_5(%arg0: i32) -> (i32, i32) {
    %c0_i32 = arith.constant 0 : i32
    %c0_i32_0 = arith.constant 0 : i32
    %c0_i32_1 = arith.constant 0 : i32
    return %c0_i32, %c0_i32_0 : i32, i32
  }
  func.func @transform_6(%arg0: i32) -> (i32, i32) {
    %c0_i32 = arith.constant 0 : i32
    %c0_i32_0 = arith.constant 0 : i32
    %c0_i32_1 = arith.constant 0 : i32
    return %c0_i32, %c0_i32_0 : i32, i32
  }
  func.func @transform_7(%arg0: i32) -> (i32, i32) {
    %c0_i32 = arith.constant 0 : i32
    %c0_i32_0 = arith.constant 0 : i32
    %c0_i32_1 = arith.constant 0 : i32
    return %c0_i32, %c0_i32_0 : i32, i32
  }
  func.func @transform_8(%arg0: i32) -> (i32, i32) {
    %c0_i32 = arith.constant 0 : i32
    %c0_i32_0 = arith.constant 0 : i32
    %c0_i32_1 = arith.constant 0 : i32
    return %c0_i32, %c0_i32_0 : i32, i32
  }
  func.func @transform_9(%arg0: i32) -> (i32, i32) {
    %c0_i32 = arith.constant 0 : i32
    %c0_i32_0 = arith.constant 0 : i32
    return %c0_i32, %arg0 : i32, i32
  }
}

</mosaic_0001>

<llo_original>
// kernel: ncf_mlp_forward.1
$region0: #{ncf_mlp_forward.1}
  #allocation0 [shape = 'u32[]', space=smem, size = 0x4, offset = 0x4, fixed_abs, tag = 'smem constant byte address 0x4 - core index']
  #allocation1 [shape = 'u32[144,128]{1,0:T(1,128)}', space=vmem, size = 0x12000, scoped, tag = 'internal scratch']
  #allocation2 [shape = 'f32[1,1]{1,0:T(1,128)S(1)}', space=vmem, size = 0x200, scoped, tag = 'scoped memory for ncf_mlp_forward.1']
  %s0 = inlined_call_operand.vmem [shape: bf16[128,16], index: 0, kind: input, shape index: {}]
  %s1 = inlined_call_operand.vmem [shape: bf16[128,16], index: 1, kind: input, shape index: {}]
  %s2 = inlined_call_operand.vmem [shape: bf16[32,16], index: 2, kind: input, shape index: {}]
  %s3 = inlined_call_operand.vmem [shape: bf16[32,16], index: 3, kind: input, shape index: {}]
  %s4 = inlined_call_operand.vmem [shape: f32[32,1], index: 4, kind: input, shape index: {}]
  %s5 = inlined_call_operand.vmem [shape: f32[16,32], index: 5, kind: input, shape index: {}]
  %s6 = inlined_call_operand.vmem [shape: f32[16,1], index: 6, kind: input, shape index: {}]
  %s7 = inlined_call_operand.vmem [shape: f32[1,16], index: 7, kind: input, shape index: {}]
  %s8 = inlined_call_operand.<no memory space> [shape: f32[1,1], index: 8, kind: input, shape index: {}]
  %s9 = inlined_call_operand.vmem [shape: f32[1,128], index: 9, kind: output, shape index: {}]
  %s10 = sld [smem:[#allocation0]]
  $region46: #{ncf_mlp_forward.1} parent=0
    _
  %s12 = ssub.s32 1, %s10
  %s13 = scalar_select 0, %s12, %s10
  %v14 = vstv %s8
  %15 = vst [vmem:[#allocation2] sm:$0x1] %v14
  // Predicated region
  $region2: #{ncf_mlp_forward.1} parent=0 // pred_check
    _
  $region3: #{ncf_mlp_forward.1} parent=0 // pred_check_branch
    %17 = sbr.rel (0) target = $region5
  $region4: #{ncf_mlp_forward.1} parent=0 // pred_region
    _
  $region5: #{ncf_mlp_forward.1} parent=0 // pred_fallthru
    _
  // Predicated region
  $region6: #{ncf_mlp_forward.1} parent=0 // pred_check
    _
  $region7: #{ncf_mlp_forward.1} parent=0 // pred_check_branch
    %19 = sbr.rel (0) target = $region9
  $region8: #{ncf_mlp_forward.1} parent=0 // pred_region
    _
  $region9: #{ncf_mlp_forward.1} parent=0 // pred_fallthru
    _
  // Predicated region
  $region10: #{ncf_mlp_forward.1} parent=0 // pred_check
    _
  $region11: #{ncf_mlp_forward.1} parent=0 // pred_check_branch
    %21 = sbr.rel (0) target = $region13
  $region12: #{ncf_mlp_forward.1} parent=0 // pred_region
    _
  $region13: #{ncf_mlp_forward.1} parent=0 // pred_fallthru
    _
  // Predicated region
  $region14: #{ncf_mlp_forward.1} parent=0 // pred_check
    _
  $region15: #{ncf_mlp_forward.1} parent=0 // pred_check_branch
    %23 = sbr.rel (0) target = $region17
  $region16: #{ncf_mlp_forward.1} parent=0 // pred_region
    _
  $region17: #{ncf_mlp_forward.1} parent=0 // pred_fallthru
    _
  // Predicated region
  $region18: #{ncf_mlp_forward.1} parent=0 // pred_check
    _
  $region19: #{ncf_mlp_forward.1} parent=0 // pred_check_branch
    %25 = sbr.rel (0) target = $region21
  $region20: #{ncf_mlp_forward.1} parent=0 // pred_region
    _
  $region21: #{ncf_mlp_forward.1} parent=0 // pred_fallthru
    _
  // Predicated region
  $region22: #{ncf_mlp_forward.1} parent=0 // pred_check
    _
  $region23: #{ncf_mlp_forward.1} parent=0 // pred_check_branch
    %27 = sbr.rel (0) target = $region25
  $region24: #{ncf_mlp_forward.1} parent=0 // pred_region
    _
  $region25: #{ncf_mlp_forward.1} parent=0 // pred_fallthru
    _
  // Predicated region
  $region26: #{ncf_mlp_forward.1} parent=0 // pred_check
    _
  $region27: #{ncf_mlp_forward.1} parent=0 // pred_check_branch
    %29 = sbr.rel (0) target = $region29
  $region28: #{ncf_mlp_forward.1} parent=0 // pred_region
    _
  $region29: #{ncf_mlp_forward.1} parent=0 // pred_fallthru
    _
  // Predicated region
  $region30: #{ncf_mlp_forward.1} parent=0 // pred_check
    _
  $region31: #{ncf_mlp_forward.1} parent=0 // pred_check_branch
    %31 = sbr.rel (0) target = $region33
  $region32: #{ncf_mlp_forward.1} parent=0 // pred_region
    _
  $region33: #{ncf_mlp_forward.1} parent=0 // pred_fallthru
    _
  // Predicated region
  $region34: #{ncf_mlp_forward.1} parent=0 // pred_check
    _
  $region35: #{ncf_mlp_forward.1} parent=0 // pred_check_branch
    %33 = sbr.rel (0) target = $region37
  $region36: #{ncf_mlp_forward.1} parent=0 // pred_region
    _
  $region37: #{ncf_mlp_forward.1} parent=0 // pred_fallthru
    _
  %v35 = vld [vmem:[%s2] sm:$0xf]
  %v36 = vld [vmem:[%s2 + $0x4] sm:$0xf]
  %v37 = vld [vmem:[%s2 + $0x8] sm:$0xf]
  %v38 = vld [vmem:[%s2 + $0xc] sm:$0xf]
  %v39 = vld [vmem:[%s0] sm:$0xf]
  %v40 = vld [vmem:[%s0 + $0x4] sm:$0xf]
  %v41 = vld [vmem:[%s0 + $0x8] sm:$0xf]
  %v42 = vld [vmem:[%s0 + $0xc] sm:$0xf]
  %v43 = vld [vmem:[%s0 + $0x10] sm:$0xf]
  %v44 = vld [vmem:[%s0 + $0x14] sm:$0xf]
  %v45 = vld [vmem:[%s0 + $0x18] sm:$0xf]
  %v46 = vld [vmem:[%s0 + $0x1c] sm:$0xf]
  %v47 = vld [vmem:[%s0 + $0x20] sm:$0xf]
  %v48 = vld [vmem:[%s0 + $0x24] sm:$0xf]
  %v49 = vld [vmem:[%s0 + $0x28] sm:$0xf]
  %v50 = vld [vmem:[%s0 + $0x2c] sm:$0xf]
  %v51 = vld [vmem:[%s0 + $0x30] sm:$0xf]
  %v52 = vld [vmem:[%s0 + $0x34] sm:$0xf]
  %v53 = vld [vmem:[%s0 + $0x38] sm:$0xf]
  %v54 = vld [vmem:[%s0 + $0x3c] sm:$0xf]
  %v55 = vld [vmem:[%s3] sm:$0xf]
  %v56 = vld [vmem:[%s3 + $0x4] sm:$0xf]
  %v57 = vld [vmem:[%s3 + $0x8] sm:$0xf]
  %v58 = vld [vmem:[%s3 + $0xc] sm:$0xf]
  %v59 = vld [vmem:[%s1] sm:$0xf]
  %v60 = vld [vmem:[%s1 + $0x4] sm:$0xf]
  %v61 = vld [vmem:[%s1 + $0x8] sm:$0xf]
  %v62 = vld [vmem:[%s1 + $0xc] sm:$0xf]
  %v63 = vld [vmem:[%s1 + $0x10] sm:$0xf]
  %v64 = vld [vmem:[%s1 + $0x14] sm:$0xf]
  %v65 = vld [vmem:[%s1 + $0x18] sm:$0xf]
  %v66 = vld [vmem:[%s1 + $0x1c] sm:$0xf]
  %v67 = vld [vmem:[%s1 + $0x20] sm:$0xf]
  %v68 = vld [vmem:[%s1 + $0x24] sm:$0xf]
  %v69 = vld [vmem:[%s1 + $0x28] sm:$0xf]
  %v70 = vld [vmem:[%s1 + $0x2c] sm:$0xf]
  %v71 = vld [vmem:[%s1 + $0x30] sm:$0xf]
  %v72 = vld [vmem:[%s1 + $0x34] sm:$0xf]
  %v73 = vld [vmem:[%s1 + $0x38] sm:$0xf]
  %v74 = vld [vmem:[%s1 + $0x3c] sm:$0xf]
  %v79 = vunpack.c.l.b16 %v55
  %v80 = vunpack.c.l.b16 %v56
  %v81 = vunpack.c.l.b16 %v57
  %v82 = vunpack.c.l.b16 %v58
  %v83 = vpack.c.b16 %v80, %v79
  %v84 = vpack.c.b16 %v82, %v81
  %v101 = vunpack.c.l.b16 %v59
  %v102 = vunpack.c.l.b16 %v60
  %v103 = vunpack.c.l.b16 %v61
  %v104 = vunpack.c.l.b16 %v62
  %v105 = vunpack.c.l.b16 %v63
  %v106 = vunpack.c.l.b16 %v64
  %v107 = vunpack.c.l.b16 %v65
  %v108 = vunpack.c.l.b16 %v66
  %v109 = vunpack.c.l.b16 %v67
  %v110 = vunpack.c.l.b16 %v68
  %v111 = vunpack.c.l.b16 %v69
  %v112 = vunpack.c.l.b16 %v70
  %v113 = vunpack.c.l.b16 %v71
  %v114 = vunpack.c.l.b16 %v72
  %v115 = vunpack.c.l.b16 %v73
  %v116 = vunpack.c.l.b16 %v74
  %v117 = vpack.c.b16 %v102, %v101
  %v118 = vpack.c.b16 %v104, %v103
  %v119 = vpack.c.b16 %v106, %v105
  %v120 = vpack.c.b16 %v108, %v107
  %v121 = vpack.c.b16 %v110, %v109
  %v122 = vpack.c.b16 %v112, %v111
  %v123 = vpack.c.b16 %v114, %v113
  %v124 = vpack.c.b16 %v116, %v115
  %vm125 = vcmask 130048
  %v127 = vsel %vm125, %v83, 0
  %v130 = vsel %vm125, %v84, 0
  %v133 = vsel %vm125, %v117, 0
  %v136 = vsel %vm125, %v118, 0
  %v139 = vsel %vm125, %v119, 0
  %v142 = vsel %vm125, %v120, 0
  %v145 = vsel %vm125, %v121, 0
  %v148 = vsel %vm125, %v122, 0
  %v151 = vsel %vm125, %v123, 0
  %v154 = vsel %vm125, %v124, 0
  %156 = vmatprep.subr.bf16.mxu0 0
  %157 = vmatpush1.bf16.xpose.msra.mxu0 %v154
  %158 = vmatprep.subr.bf16.mxu0 0
  %159 = vmatpush1.bf16.xpose.msra.mxu0 %v151
  %160 = vmatprep.subr.bf16.mxu0 0
  %161 = vmatpush1.bf16.xpose.msra.mxu0 %v148
  %162 = vmatprep.subr.bf16.mxu0 0
  %163 = vmatpush1.bf16.xpose.msra.mxu0 %v145
  %164 = vmatprep.subr.bf16.mxu0 0
  %165 = vmatpush1.bf16.xpose.msra.mxu0 %v142
  %166 = vmatprep.subr.bf16.mxu0 0
  %167 = vmatpush1.bf16.xpose.msra.mxu0 %v139
  %168 = vmatprep.subr.bf16.mxu0 0
  %169 = vmatpush1.bf16.xpose.msra.mxu0 %v136
  %170 = vmatprep.subr.bf16.mxu0 0
  %171 = vmatpush1.bf16.xpose.msra.mxu0 %v133
  %172 = vmatprep.subr.bf16.mxu0 0
  %173 = vmatpush2.bf16.xpose.msra.mxu0 0
  %174 = vmatprep.subr.bf16.mxu0 0
  %175 = vmatpush2.bf16.xpose.msra.mxu0 0
  %176 = vmatprep.subr.bf16.mxu0 0
  %177 = vmatpush2.bf16.xpose.msra.mxu0 0
  %178 = vmatprep.subr.bf16.mxu0 0
  %179 = vmatpush2.bf16.xpose.msra.mxu0 0
  %180 = vmatprep.subr.bf16.mxu0 0
  %181 = vmatpush2.bf16.xpose.msra.mxu0 0
  %182 = vmatprep.subr.bf16.mxu0 0
  %183 = vmatpush2.bf16.xpose.msra.mxu0 0
  %184 = vmatprep.subr.bf16.mxu0 0
  %185 = vmatpush2.bf16.xpose.msra.mxu0 0
  %186 = vmatprep.subr.bf16.mxu0 0
  %187 = vmatpush2.bf16.xpose.msra.mxu0 0
  %188 = vmatprep.mubr.bf16.mxu0 0
  %189 = vmatmul.mubr.bf16.gmra.mxu0 %v127
  %v190 = vpop.f32.mrf.mxu0
  %v191 = vadd.f32 0.0, %v190
  %v192 = vpop.f32.mrf.mxu0
  %v193 = vpop.f32.mrf.mxu0
  %v194 = vadd.f32 0.0, %v193
  %v195 = vpop.f32.mrf.mxu0
  %196 = vmatprep.mubr.bf16.mxu0 0
  %197 = vmatmul.mubr.bf16.gmra.mxu0 %v130
  %v198 = vpop.f32.mrf.mxu0
  %v199 = vadd.f32 0.0, %v198
  %v200 = vpop.f32.mrf.mxu0
  %v201 = vpop.f32.mrf.mxu0
  %v202 = vadd.f32 0.0, %v201
  %v203 = vpop.f32.mrf.mxu0
  %204 = vdwg.mxu0
  %v209 = vunpack.c.l.b16 %v35
  %v210 = vunpack.c.l.b16 %v36
  %v211 = vunpack.c.l.b16 %v37
  %v212 = vunpack.c.l.b16 %v38
  %v213 = vpack.c.b16 %v210, %v209
  %v214 = vpack.c.b16 %v212, %v211
  %v231 = vunpack.c.l.b16 %v39
  %v232 = vunpack.c.l.b16 %v40
  %v233 = vunpack.c.l.b16 %v41
  %v234 = vunpack.c.l.b16 %v42
  %v235 = vunpack.c.l.b16 %v43
  %v236 = vunpack.c.l.b16 %v44
  %v237 = vunpack.c.l.b16 %v45
  %v238 = vunpack.c.l.b16 %v46
  %v239 = vunpack.c.l.b16 %v47
  %v240 = vunpack.c.l.b16 %v48
  %v241 = vunpack.c.l.b16 %v49
  %v242 = vunpack.c.l.b16 %v50
  %v243 = vunpack.c.l.b16 %v51
  %v244 = vunpack.c.l.b16 %v52
  %v245 = vunpack.c.l.b16 %v53
  %v246 = vunpack.c.l.b16 %v54
  %v247 = vpack.c.b16 %v232, %v231
  %v248 = vpack.c.b16 %v234, %v233
  %v249 = vpack.c.b16 %v236, %v235
  %v250 = vpack.c.b16 %v238, %v237
  %v251 = vpack.c.b16 %v240, %v239
  %v252 = vpack.c.b16 %v242, %v241
  %v253 = vpack.c.b16 %v244, %v243
  %v254 = vpack.c.b16 %v246, %v245
  %v256 = vsel %vm125, %v213, 0
  %v259 = vsel %vm125, %v214, 0
  %v262 = vsel %vm125, %v247, 0
  %v265 = vsel %vm125, %v248, 0
  %v268 = vsel %vm125, %v249, 0
  %v271 = vsel %vm125, %v250, 0
  %v274 = vsel %vm125, %v251, 0
  %v277 = vsel %vm125, %v252, 0
  %v280 = vsel %vm125, %v253, 0
  %v283 = vsel %vm125, %v254, 0
  %285 = vmatprep.subr.bf16.mxu0 0
  %286 = vmatpush1.bf16.xpose.msra.mxu0 %v283
  %287 = vmatprep.subr.bf16.mxu0 0
  %288 = vmatpush1.bf16.xpose.msra.mxu0 %v280
  %289 = vmatprep.subr.bf16.mxu0 0
  %290 = vmatpush1.bf16.xpose.msra.mxu0 %v277
  %291 = vmatprep.subr.bf16.mxu0 0
  %292 = vmatpush1.bf16.xpose.msra.mxu0 %v274
  %293 = vmatprep.subr.bf16.mxu0 0
  %294 = vmatpush1.bf16.xpose.msra.mxu0 %v271
  %295 = vmatprep.subr.bf16.mxu0 0
  %296 = vmatpush1.bf16.xpose.msra.mxu0 %v268
  %297 = vmatprep.subr.bf16.mxu0 0
  %298 = vmatpush1.bf16.xpose.msra.mxu0 %v265
  %299 = vmatprep.subr.bf16.mxu0 0
  %300 = vmatpush1.bf16.xpose.msra.mxu0 %v262
  %301 = vmatprep.subr.bf16.mxu0 0
  %302 = vmatpush2.bf16.xpose.msra.mxu0 0
  %303 = vmatprep.subr.bf16.mxu0 0
  %304 = vmatpush2.bf16.xpose.msra.mxu0 0
  %305 = vmatprep.subr.bf16.mxu0 0
  %306 = vmatpush2.bf16.xpose.msra.mxu0 0
  %307 = vmatprep.subr.bf16.mxu0 0
  %308 = vmatpush2.bf16.xpose.msra.mxu0 0
  %309 = vmatprep.subr.bf16.mxu0 0
  %310 = vmatpush2.bf16.xpose.msra.mxu0 0
  %311 = vmatprep.subr.bf16.mxu0 0
  %312 = vmatpush2.bf16.xpose.msra.mxu0 0
  %313 = vmatprep.subr.bf16.mxu0 0
  %314 = vmatpush2.bf16.xpose.msra.mxu0 0
  %315 = vmatprep.subr.bf16.mxu0 0
  %316 = vmatpush2.bf16.xpose.msra.mxu0 0
  %317 = vmatprep.mubr.bf16.mxu0 0
  %318 = vmatmul.mubr.bf16.gmra.mxu0 %v256
  %v319 = vpop.f32.mrf.mxu0
  %v320 = vadd.f32 %v191, %v319
  %v321 = vpop.f32.mrf.mxu0
  %v322 = vpop.f32.mrf.mxu0
  %v323 = vadd.f32 %v194, %v322
  %v324 = vpop.f32.mrf.mxu0
  %325 = vmatprep.mubr.bf16.mxu0 0
  %326 = vmatmul.mubr.bf16.gmra.mxu0 %v259
  %v327 = vpop.f32.mrf.mxu0
  %v328 = vadd.f32 %v199, %v327
  %v329 = vpop.f32.mrf.mxu0
  %v330 = vpop.f32.mrf.mxu0
  %v331 = vadd.f32 %v202, %v330
  %v332 = vpop.f32.mrf.mxu0
  %333 = vdwg.mxu0
  %v334 = vld [vmem:[%s4] sm:$0xff]
  %v335 = vld [vmem:[%s4 + $0x8] sm:$0xff]
  %v336 = vld [vmem:[%s4 + $0x10] sm:$0xff]
  %v337 = vld [vmem:[%s4 + $0x18] sm:$0xff]
  %339 = vset.pattern.permute.xlu0 0
  %340 = vperm.xlu0 %339, %v334
  %v341 = vpop.permute.xlu0 %340
  %344 = vset.pattern.permute.xlu0 0
  %345 = vperm.xlu0 %344, %v335
  %v346 = vpop.permute.xlu0 %345
  %349 = vset.pattern.permute.xlu0 0
  %350 = vperm.xlu0 %349, %v336
  %v351 = vpop.permute.xlu0 %350
  %354 = vset.pattern.permute.xlu0 0
  %355 = vperm.xlu0 %354, %v337
  %v356 = vpop.permute.xlu0 %355
  %v358 = vadd.f32 %v320, %v341
  %v359 = vadd.f32 %v323, %v346
  %v360 = vadd.f32 %v328, %v351
  %v361 = vadd.f32 %v331, %v356
  %v362 = vmax.f32 %v358, 0.0
  %v363 = vmax.f32 %v359, 0.0
  %v364 = vmax.f32 %v360, 0.0
  %v365 = vmax.f32 %v361, 0.0
  %v366 = vld [vmem:[%s5] sm:$0xff]
  %v367 = vld [vmem:[%s5 + $0x8] sm:$0xff]
  %v368 = vld [vmem:[%s6] sm:$0xff]
  %v369 = vld [vmem:[%s6 + $0x8] sm:$0xff]
  %371 = vset.pattern.permute.xlu0 0
  %372 = vperm.xlu0 %371, %v368
  %v373 = vpop.permute.xlu0 %372
  %376 = vset.pattern.permute.xlu0 0
  %377 = vperm.xlu0 %376, %v369
  %v378 = vpop.permute.xlu0 %377
  %vm380 = vcmask 261120
  %v382 = vsel %vm380, %v366, 0
  %v385 = vsel %vm380, %v367, 0
  %387 = vmatprep.subr.mxu0 0.0
  %388 = vmatpush1.msra.mxu0 0.0
  %389 = vmatprep.subr.mxu0 0.0
  %390 = vmatpush1.msra.mxu0 0.0
  %391 = vmatprep.subr.mxu0 0.0
  %392 = vmatpush1.msra.mxu0 0.0
  %393 = vmatprep.subr.mxu0 0.0
  %394 = vmatpush1.msra.mxu0 0.0
  %395 = vmatprep.subr.mxu0 0.0
  %396 = vmatpush1.msra.mxu0 0.0
  %397 = vmatprep.subr.mxu0 0.0
  %398 = vmatpush1.msra.mxu0 0.0
  %399 = vmatprep.subr.mxu0 0.0
  %400 = vmatpush1.msra.mxu0 0.0
  %401 = vmatprep.subr.mxu0 0.0
  %402 = vmatpush1.msra.mxu0 0.0
  %403 = vmatprep.subr.mxu0 0.0
  %404 = vmatpush1.msra.mxu0 0.0
  %405 = vmatprep.subr.mxu0 0.0
  %406 = vmatpush1.msra.mxu0 0.0
  %407 = vmatprep.subr.mxu0 0.0
  %408 = vmatpush1.msra.mxu0 0.0
  %409 = vmatprep.subr.mxu0 0.0
  %410 = vmatpush1.msra.mxu0 0.0
  %411 = vmatprep.subr.mxu0 0.0
  %412 = vmatpush1.msra.mxu0 %v365
  %413 = vmatprep.subr.mxu0 0.0
  %414 = vmatpush1.msra.mxu0 %v364
  %415 = vmatprep.subr.mxu0 0.0
  %416 = vmatpush1.msra.mxu0 %v363
  %417 = vmatprep.subr.mxu0 0.0
  %418 = vmatpush1.msra.mxu0 %v362
  %419 = vmatprep.subr.mxu0 0.0
  %420 = vmatpush2.msra.mxu0 0.0
  %421 = vmatprep.subr.mxu0 0.0
  %422 = vmatpush2.msra.mxu0 0.0
  %423 = vmatprep.subr.mxu0 0.0
  %424 = vmatpush2.msra.mxu0 0.0
  %425 = vmatprep.subr.mxu0 0.0
  %426 = vmatpush2.msra.mxu0 0.0
  %427 = vmatprep.subr.mxu0 0.0
  %428 = vmatpush2.msra.mxu0 0.0
  %429 = vmatprep.subr.mxu0 0.0
  %430 = vmatpush2.msra.mxu0 0.0
  %431 = vmatprep.subr.mxu0 0.0
  %432 = vmatpush2.msra.mxu0 0.0
  %433 = vmatprep.subr.mxu0 0.0
  %434 = vmatpush2.msra.mxu0 0.0
  %435 = vmatprep.subr.mxu0 0.0
  %436 = vmatpush2.msra.mxu0 0.0
  %437 = vmatprep.subr.mxu0 0.0
  %438 = vmatpush2.msra.mxu0 0.0
  %439 = vmatprep.subr.mxu0 0.0
  %440 = vmatpush2.msra.mxu0 0.0
  %441 = vmatprep.subr.mxu0 0.0
  %442 = vmatpush2.msra.mxu0 0.0
  %443 = vmatprep.subr.mxu0 0.0
  %444 = vmatpush2.msra.mxu0 0.0
  %445 = vmatprep.subr.mxu0 0.0
  %446 = vmatpush2.msra.mxu0 0.0
  %447 = vmatprep.subr.mxu0 0.0
  %448 = vmatpush2.msra.mxu0 0.0
  %449 = vmatprep.subr.mxu0 0.0
  %450 = vmatpush2.msra.mxu0 0.0
  %451 = vmatprep.mubr.f32.mxu0 0.0
  %452 = vmatmul.mubr.f32.gmra.mxu0 %v382
  %v453 = vpop.f32.mrf.mxu0
  %v454 = vadd.f32 %v373, %v453
  %v455 = vpop.f32.mrf.mxu0
  %456 = vmatprep.mubr.f32.mxu0 0.0
  %457 = vmatmul.mubr.f32.gmra.mxu0 %v385
  %v458 = vpop.f32.mrf.mxu0
  %v459 = vadd.f32 %v378, %v458
  %v460 = vpop.f32.mrf.mxu0
  %461 = vdwg.mxu0
  %v462 = vmax.f32 %v454, 0.0
  %v463 = vmax.f32 %v459, 0.0
  %v464 = vld [vmem:[%s7] sm:$0x1]
  %v465 = vld [vmem:[#allocation2] sm:$0x1]
  %467 = vset.pattern.permute.xlu0 0
  %468 = vperm.xlu0 %467, %v465
  %v469 = vpop.permute.xlu0 %468
  %v471 = vlaneseq
  %v472 = vshrl.u32 %v471, 7
  %v473 = vsub.s32 0, %v472
  %v474 = vrot.slane %v469, %v473
  %v476 = vsel %vm125, %v464, 0
  %478 = vmatprep.subr.mxu0 0.0
  %479 = vmatpush1.msra.mxu0 0.0
  %480 = vmatprep.subr.mxu0 0.0
  %481 = vmatpush1.msra.mxu0 0.0
  %482 = vmatprep.subr.mxu0 0.0
  %483 = vmatpush1.msra.mxu0 0.0
  %484 = vmatprep.subr.mxu0 0.0
  %485 = vmatpush1.msra.mxu0 0.0
  %486 = vmatprep.subr.mxu0 0.0
  %487 = vmatpush1.msra.mxu0 0.0
  %488 = vmatprep.subr.mxu0 0.0
  %489 = vmatpush1.msra.mxu0 0.0
  %490 = vmatprep.subr.mxu0 0.0
  %491 = vmatpush1.msra.mxu0 0.0
  %492 = vmatprep.subr.mxu0 0.0
  %493 = vmatpush1.msra.mxu0 0.0
  %494 = vmatprep.subr.mxu0 0.0
  %495 = vmatpush1.msra.mxu0 0.0
  %496 = vmatprep.subr.mxu0 0.0
  %497 = vmatpush1.msra.mxu0 0.0
  %498 = vmatprep.subr.mxu0 0.0
  %499 = vmatpush1.msra.mxu0 0.0
  %500 = vmatprep.subr.mxu0 0.0
  %501 = vmatpush1.msra.mxu0 0.0
  %502 = vmatprep.subr.mxu0 0.0
  %503 = vmatpush1.msra.mxu0 0.0
  %504 = vmatprep.subr.mxu0 0.0
  %505 = vmatpush1.msra.mxu0 0.0
  %506 = vmatprep.subr.mxu0 0.0
  %507 = vmatpush1.msra.mxu0 %v463
  %508 = vmatprep.subr.mxu0 0.0
  %509 = vmatpush1.msra.mxu0 %v462
  %510 = vmatprep.subr.mxu0 0.0
  %511 = vmatpush2.msra.mxu0 0.0
  %512 = vmatprep.subr.mxu0 0.0
  %513 = vmatpush2.msra.mxu0 0.0
  %514 = vmatprep.subr.mxu0 0.0
  %515 = vmatpush2.msra.mxu0 0.0
  %516 = vmatprep.subr.mxu0 0.0
  %517 = vmatpush2.msra.mxu0 0.0
  %518 = vmatprep.subr.mxu0 0.0
  %519 = vmatpush2.msra.mxu0 0.0
  %520 = vmatprep.subr.mxu0 0.0
  %521 = vmatpush2.msra.mxu0 0.0
  %522 = vmatprep.subr.mxu0 0.0
  %523 = vmatpush2.msra.mxu0 0.0
  %524 = vmatprep.subr.mxu0 0.0
  %525 = vmatpush2.msra.mxu0 0.0
  %526 = vmatprep.subr.mxu0 0.0
  %527 = vmatpush2.msra.mxu0 0.0
  %528 = vmatprep.subr.mxu0 0.0
  %529 = vmatpush2.msra.mxu0 0.0
  %530 = vmatprep.subr.mxu0 0.0
  %531 = vmatpush2.msra.mxu0 0.0
  %532 = vmatprep.subr.mxu0 0.0
  %533 = vmatpush2.msra.mxu0 0.0
  %534 = vmatprep.subr.mxu0 0.0
  %535 = vmatpush2.msra.mxu0 0.0
  %536 = vmatprep.subr.mxu0 0.0
  %537 = vmatpush2.msra.mxu0 0.0
  %538 = vmatprep.subr.mxu0 0.0
  %539 = vmatpush2.msra.mxu0 0.0
  %540 = vmatprep.subr.mxu0 0.0
  %541 = vmatpush2.msra.mxu0 0.0
  %542 = vmatprep.mubr.f32.mxu0 0.0
  %543 = vmatmul.mubr.f32.gmra.mxu0 %v476
  %v544 = vpop.f32.mrf.mxu0
  %v545 = vadd.f32 %v474, %v544
  %v546 = vpop.f32.mrf.mxu0
  %547 = vdwg.mxu0
  %548 = vst [vmem:[%s9] sm:$0x1] %v545
  // Predicated region
  $region38: #{ncf_mlp_forward.1} parent=0 // pred_check
    _
  $region39: #{ncf_mlp_forward.1} parent=0 // pred_check_branch
    %550 = sbr.rel (0) target = $region41
  $region40: #{ncf_mlp_forward.1} parent=0 // pred_region
    _
  $region41: #{ncf_mlp_forward.1} parent=0 // pred_fallthru
    _
  // Predicated region
  $region42: #{ncf_mlp_forward.1} parent=0 // pred_check
    _
  $region43: #{ncf_mlp_forward.1} parent=0 // pred_check_branch
    %552 = sbr.rel (0) target = $region45
  $region44: #{ncf_mlp_forward.1} parent=0 // pred_region
    _
  $region45: #{ncf_mlp_forward.1} parent=0 // pred_fallthru
    _

</llo_original>
